<compile_context>
chip_gen: v6e
topology: v6e:2x2x1
jax: 0.10.0
libtpu: 0.0.40
codegen_flags: <defaults>
</compile_context>

<pallas_src>
import functools

import jax
import jax.numpy as jnp
from jax.experimental import pallas as pl
from jax.experimental.pallas import tpu as pltpu

_LANE = 128


def _round_up(n: int, m: int) -> int:
    return ((n + m - 1) // m) * m


def _cdiv(a: int, b: int) -> int:
    return (a + b - 1) // b


def _sublane(dtype) -> int:
    # 8 for f32, 16 for bf16, 32 for int8/fp8.
    return max(8, 32 // jnp.dtype(dtype).itemsize)


def _vmem_budget() -> int:
    try:
        cap = int(pltpu.get_tpu_info().vmem_capacity_bytes)
    except Exception:  # emulator / unknown part
        cap = 64 << 20
    return (cap * 3) // 4   # ~96 MiB on v5e/v6e (128 MiB), ~48 MiB on v7x (64 MiB)


def _block_spec(shape, index_map, *, single_buffered=False):
    """BlockSpec, optionally requesting a single (non-double-buffered) buffer."""
    if single_buffered and hasattr(pl, "Buffered"):
        try:
            return pl.BlockSpec(shape, index_map, pipeline_mode=pl.Buffered(1))
        except TypeError:
            pass
    return pl.BlockSpec(shape, index_map)


def _residual_linear_kernel(x_ref, w_ref, b_ref, o_ref, *, tn, n_blocks,
                            compute_dtype):
    # fn(x) = x @ W + b   ;   out = fn(x) + x   (ResidualAdd semantics)
    x = x_ref[...]                                        # (tm, D), stored dtype
    y = jnp.dot(x.astype(compute_dtype), w_ref[...],      # W pre-cast in wrapper
                preferred_element_type=jnp.float32)       # f32 MXU accumulation
    if n_blocks == 1:
        res = x                                           # full hidden dim
    else:
        # residual columns for this output block, sliced from the resident x tile
        start = pl.multiple_of(pl.program_id(1) * tn, _LANE)
        res = x_ref[:, pl.ds(start, tn)]
    # Single f32 pass: bias + residual folded together, one downcast at the end.
    o_ref[...] = (y + (res.astype(jnp.float32) + b_ref[...])).astype(o_ref.dtype)


def residual_add_linear(x, w, b, *, block_m=1024,
                        compute_dtype=jnp.bfloat16,
                        vmem_limit_bytes=None):
    """out = (x @ w + b) + x, computed in a single fused Pallas kernel.

    x: (B, S, D)   w: (D, D)   b: (D,)
    Output dtype follows x.dtype (use bf16 activations for mem-bound wins).
    """
    B, S, D = x.shape
    M = B * S
    x2d = x.reshape(M, D)                       # metadata-only reshape
    w_c = w.astype(compute_dtype)               # cast ONCE in the wrapper
    b2d = b.astype(jnp.float32).reshape(1, D)   # bias added in f32

    x_bytes = jnp.dtype(x.dtype).itemsize
    c_bytes = jnp.dtype(compute_dtype).itemsize
    budget = int(vmem_limit_bytes) if vmem_limit_bytes is not None else _vmem_budget()

    # ---- weight placement: resident (single-buffered) or column-streamed ----
    w_resident = D * D * c_bytes
    if w_resident <= budget // 2 or D % _LANE != 0:
        tn, n_blocks, w_single = D, 1, True           # resident weight
        w_footprint = w_resident
    else:
        # Stream (D, tn) weight blocks (double-buffered).  tn must divide D so
        # the in-kernel residual column slice stays in bounds, and be a
        # multiple of 128 for lane-dense stores.
        tn = max(_LANE, ((budget // 3) // (2 * D * c_bytes)) // _LANE * _LANE)
        tn = min(tn, D)
        while D % tn != 0:
            tn -= _LANE
        n_blocks, w_single = _cdiv(D, tn), False
        w_footprint = 2 * D * tn * c_bytes

    # ---- pick the M tile against the real per-tile VMEM footprint -----------
    sub = _sublane(x.dtype)
    per_row = (2 * D * x_bytes        # x tile, double-buffered
               + 2 * tn * x_bytes     # out tile, double-buffered
               + D * c_bytes          # bf16 cast of the x tile inside the kernel
               + 2 * tn * 4)          # f32 matmul result + f32 add temp
    avail = max(budget - w_footprint - 4 * tn * 4 - (2 << 20), per_row * sub)
    tm = max(sub, min(block_m, avail // per_row))
    if M <= sub:
        tm = M                                   # full-extent block for tiny M
    else:
        tm = max(sub, (tm // sub) * sub)
        tm = min(tm, _round_up(_cdiv(M, 2), sub))  # >= 2 M tiles for megacore
        tm = min(tm, _round_up(M, sub))
    grid = (_cdiv(M, tm), n_blocks)              # partial last M block is masked

    kernel = functools.partial(_residual_linear_kernel, tn=tn,
                               n_blocks=n_blocks, compute_dtype=compute_dtype)

    cost = pl.CostEstimate(
        flops=2 * M * D * D,
        transcendentals=0,
        bytes_accessed=2 * M * D * x_bytes + D * D * c_bytes + D * 4)

    out2d = pl.pallas_call(
        kernel,
        out_shape=jax.ShapeDtypeStruct((M, D), x.dtype),
        grid_spec=pltpu.PrefetchScalarGridSpec(
            num_scalar_prefetch=0,
            grid=grid,
            in_specs=[
                # x: streamed per M tile, reused across the (fast) N axis
                pl.BlockSpec((tm, D), lambda i, j: (i, 0)),
                # w: resident (single-buffered) or column-streamed
                _block_spec((D, tn), lambda i, j: (0, j), single_buffered=w_single),
                # b: same placement as the weight columns
                _block_spec((1, tn), lambda i, j: (0, j), single_buffered=w_single),
            ],
            out_specs=pl.BlockSpec((tm, tn), lambda i, j: (i, j)),
        ),
        compiler_params=pltpu.CompilerParams(
            dimension_semantics=("parallel", "arbitrary"),
            vmem_limit_bytes=budget,
        ),
        cost_estimate=cost,
    )(x2d, w_c, b2d)

    return out2d.reshape(B, S, D)


def _reference(x, w, b, compute_dtype=jnp.bfloat16):
    # Pure-JAX ResidualAdd(Linear) mirroring the kernel's precision recipe:
    # bf16 operands on the matmul, f32 accumulation, bias + residual in f32.
    B, S, D = x.shape
    x2d = x.reshape(B * S, D)
    y = jnp.dot(x2d.astype(compute_dtype), w.astype(compute_dtype),
                preferred_element_type=jnp.float32)
    out = y + (x2d.astype(jnp.float32) + b.astype(jnp.float32))
    return out.astype(x.dtype).reshape(B, S, D)


def _check(out, ref, name, atol, rtol):
    assert out.shape == ref.shape, f"{name}: shape mismatch"
    ok = jnp.allclose(out.astype(jnp.float32), ref.astype(jnp.float32),
                      atol=atol, rtol=rtol)
    assert bool(ok), f"{name}: mismatch vs reference"


if __name__ == "__main__":
    # --- small demo shape implied by the module: batch=2, seq=8, hidden=32 ---
    kx, kw, kb = jax.random.split(jax.random.PRNGKey(0), 3)
    B, S, D = 2, 8, 32
    x = jax.random.normal(kx, (B, S, D), dtype=jnp.float32)
    # Deterministic synthetic "Linear" parameters (not a checkpoint).
    w = jax.random.normal(kw, (D, D), dtype=jnp.float32) * 0.02
    b = jax.random.normal(kb, (D,), dtype=jnp.float32) * 0.01

    out = residual_add_linear(x, w, b)
    jax.block_until_ready(out)
    _check(out, _reference(x, w, b), "small", atol=1e-3, rtol=1e-3)

    # --- lane-dense shape exercising the multi-tile, pipelined grid path -----
    kx2, kw2, kb2 = jax.random.split(jax.random.PRNGKey(1), 3)
    B2, S2, D2 = 2, 256, 256                     # M = 512 rows, D % 128 == 0
    x2 = jax.random.normal(kx2, (B2, S2, D2), dtype=jnp.float32)
    w2 = jax.random.normal(kw2, (D2, D2), dtype=jnp.float32) * 0.02
    b2 = jax.random.normal(kb2, (D2,), dtype=jnp.float32) * 0.01
    out2 = residual_add_linear(x2, w2, b2, block_m=128)      # grid = (4, 1)
    jax.block_until_ready(out2)
    _check(out2, _reference(x2, w2, b2), "tiled", atol=1e-3, rtol=1e-3)

    # --- non-divisible M: relies on Pallas boundary masking (no host-side pad)
    kx3 = jax.random.PRNGKey(2)
    x3 = jax.random.normal(kx3, (2, 10, D), dtype=jnp.float32)   # M = 20
    out3 = residual_add_linear(x3, w, b)
    jax.block_until_ready(out3)
    _check(out3, _reference(x3, w, b), "ragged-M", atol=1e-3, rtol=1e-3)

    # --- bf16 activations (mem-bound recommendation): out dtype follows x ----
    x4 = x2.astype(jnp.bfloat16)
    out4 = residual_add_linear(x4, w2, b2, block_m=128)
    jax.block_until_ready(out4)
    _check(out4, _reference(x4, w2, b2), "bf16-io", atol=3e-2, rtol=3e-2)

    print("KERNEL_OK")
</pallas_src>

<mosaic_0001>
module attributes {stable_mosaic.version = 11 : i64} {
  func.func @_residual_linear_kernel(%arg0: i32, %arg1: i32, %arg2: memref<8x32xf32, #tpu.memory_space<vmem>>, %arg3: memref<32x32xbf16, #tpu.memory_space<vmem>>, %arg4: memref<1x32xf32, #tpu.memory_space<vmem>>, %arg5: memref<8x32xf32, #tpu.memory_space<vmem>>) attributes {dimension_semantics = [#tpu.dimension_semantics<parallel>, #tpu.dimension_semantics<arbitrary>], iteration_bounds = array<i64: 2, 1>, scalar_prefetch = 0 : i64, scratch_operands = 0 : i64, tpu.core_type = #tpu.core_type<tc>, window_params = [{transform_indices = @transform_0, window_bounds = array<i64: 8, 32>}, {pipeline_mode = #tpu.pipeline_mode<synchronous>, transform_indices = @transform_1, window_bounds = array<i64: 32, 32>}, {pipeline_mode = #tpu.pipeline_mode<synchronous>, transform_indices = @transform_2, window_bounds = array<i64: 1, 32>}, {transform_indices = @transform_3, window_bounds = array<i64: 8, 32>}]} {
    %c0 = arith.constant 0 : index
    %c0_0 = arith.constant 0 : index
    %0 = vector.load %arg2[%c0, %c0_0] : memref<8x32xf32, #tpu.memory_space<vmem>>, vector<8x32xf32>
    %1 = arith.truncf %0 : vector<8x32xf32> to vector<8x32xbf16>
    %c0_1 = arith.constant 0 : index
    %c0_2 = arith.constant 0 : index
    %2 = vector.load %arg3[%c0_1, %c0_2] : memref<32x32xbf16, #tpu.memory_space<vmem>>, vector<32x32xbf16>
    %cst = arith.constant dense<0.000000e+00> : vector<8x32xf32>
    %3 = tpu.matmul %1, %2, %cst {dimension_numbers = #tpu.dot_dimension_numbers<[1], [0], [0], [1], [0, 0, 1, 1], [], []>} : vector<8x32xbf16>, vector<32x32xbf16>, vector<8x32xf32> -> vector<8x32xf32>
    %c0_3 = arith.constant 0 : index
    %c0_4 = arith.constant 0 : index
    %4 = vector.load %arg4[%c0_3, %c0_4] : memref<1x32xf32, #tpu.memory_space<vmem>>, vector<1x32xf32>
    %5 = vector.broadcast %4 : vector<1x32xf32> to vector<8x32xf32>
    %6 = arith.addf %0, %5 : vector<8x32xf32>
    %7 = arith.addf %3, %6 : vector<8x32xf32>
    %c0_5 = arith.constant 0 : index
    %c0_6 = arith.constant 0 : index
    %8 = vector.load %arg5[%c0_5, %c0_6] : memref<8x32xf32, #tpu.memory_space<vmem>>, vector<8x32xf32>
    tpu.vector_store %arg5[%c0_5, %c0_6], %7 {strides = array<i32>} : memref<8x32xf32, #tpu.memory_space<vmem>>, vector<8x32xf32>,
    return
  }
  func.func @transform_0(%arg0: i32, %arg1: i32) -> (i32, i32) {
    %c0_i32 = arith.constant 0 : i32
    %c0_i32_0 = arith.constant 0 : i32
    return %arg0, %c0_i32 : i32, i32
  }
  func.func @transform_1(%arg0: i32, %arg1: i32) -> (i32, i32) {
    %c0_i32 = arith.constant 0 : i32
    %c0_i32_0 = arith.constant 0 : i32
    return %c0_i32, %arg1 : i32, i32
  }
  func.func @transform_2(%arg0: i32, %arg1: i32) -> (i32, i32) {
    %c0_i32 = arith.constant 0 : i32
    %c0_i32_0 = arith.constant 0 : i32
    return %c0_i32, %arg1 : i32, i32
  }
  func.func @transform_3(%arg0: i32, %arg1: i32) -> (i32, i32) {
    %c0_i32 = arith.constant 0 : i32
    return %arg0, %arg1 : i32, i32
  }
}

</mosaic_0001>

<llo_original>
// kernel: tpu_custom_call.1
$region0: #{tpu_custom_call.1}
  #allocation0 [shape = 'u32[]', space=smem, size = 0x4, offset = 0x4, fixed_abs, tag = 'smem constant byte address 0x4 - core index']
  #allocation1 [shape = 'u32[144,128]{1,0:T(1,128)}', space=vmem, size = 0x12000, scoped, tag = 'internal scratch']
  %s0 = inlined_call_operand.hbm [shape: f32[16,32], index: 0, kind: input, shape index: {}]
  %s1 = inlined_call_operand.hbm [shape: bf16[32,32], index: 1, kind: input, shape index: {}]
  %s2 = inlined_call_operand.vmem [shape: f32[1,32], index: 2, kind: input, shape index: {}]
  %s3 = inlined_call_operand.hbm [shape: f32[16,32], index: 3, kind: output, shape index: {}]
  %s4 = sld [smem:[#allocation0]]
  $region53: #{tpu_custom_call.1} parent=0
    _
  %s6 = ssub.s32 1, %s4
  %s7 = scalar_select 0, %s6, %s4
  $region1: #{tpu_custom_call.1} parent=0
    #allocation2 [shape = 'u8[8192]{0}', space=vmem, size = 0x2000, scoped, tag = 'input window, operand 0']
    #allocation3 [shape = 's32[2]{0}', space=sflag, size = 0x8, scoped, tag = 'scoped memory for tpu_custom_call.1']
    #allocation4 [shape = 's32[2]{0}', space=sflag, size = 0x8, scoped, tag = 'scoped memory for tpu_custom_call.1']
    #allocation5 [shape = 'u8[8192]{0}', space=vmem, size = 0x2000, scoped, tag = 'input window, operand 1, single buffered']
    #allocation6 [shape = 's32[1]{0}', space=sflag, size = 0x4, scoped, tag = 'scoped memory for tpu_custom_call.1']
    #allocation7 [shape = 'u8[8192]{0}', space=vmem, size = 0x2000, scoped, tag = 'output window, operand 0']
    %8 = vsyncpa [#allocation3], 0
    %s9 = scalar_lea.sflag [#allocation3], 1
    %10 = vsyncpa %s9, 0
    %11 = vsyncpa [#allocation6], 0
    %12 = vsyncpa [#allocation4], 0
    %s13 = scalar_lea.sflag [#allocation4], 1
    %14 = vsyncpa %s13, 0
    loop: start=0, step=1, limit=4
    $region2: #{tpu_custom_call.1} parent=1 // loop_pre_header
      _
    $region3: #{tpu_custom_call.1} parent=1 // loop_header
      %s16 = sphi 0, %s20
      %p17 = scmp.ge.s32.totalorder %s16, 4
      %s23 = sphi 0, %s35
      %s24 = sphi 0, %s31
      %s25 = sphi 0, %s23
      %s26 = sphi 0, %s24
      %s27 = sphi 0, %s25
      %s28 = sphi 0, %s26
      %s38 = sphi 0, %s40
      %s41 = sphi 0, %s38
      %s42 = sphi 0, %s41
      %s58 = sphi 0, %s42
      %s64 = sphi 0, %s66
      %s67 = sphi 0, %s64
      %s68 = sphi 0, %s67
      %s84 = sphi 0, %s68
      %s90 = sphi 0, %s92
      %s93 = sphi 0, %s90
      %s94 = sphi 0, %s93
      %s110 = sphi 0, %s94
      %s118 = sphi 0, %s120
      %s121 = sphi 0, %s118
      %s122 = sphi 0, %s121
      %s138 = sphi 0, %s122
    $region4: #{tpu_custom_call.1} parent=1 // loop_header_branch
      %19 = sbr.rel (%p17) target = $region8
    $region5: #{tpu_custom_call.1} parent=1 // loop_body
      %s21 = ssub.s32 %s16, 1
      %s22 = ssub.s32 %s16, 2
      %s29 = sadd.s32 1, %s24
      %p30 = scmp.ge.s32.totalorder %s29, 1
      %s31 = scalar_select %p30, 0, %s29
      %s32 = sadd.s32 1, %s23
      %s33 = scalar_select %p30, %s32, %s23
      %p34 = scmp.ge.s32.totalorder %s33, 2
      %s35 = scalar_select %p34, 0, %s33
      %s36 = ssub.s32 %s23, %s35
      %p37 = scmp.eq.s32.totalorder %s36, 0
      %s39 = sadd.s32 %s38, 1
      %s40 = scalar_select %p37, %s38, %s39
      %p43 = pneg %p37
      %p44 = scmp.eq.s32.totalorder %s16, 1
      %p45 = por %p43, %p44
      %p46 = scmp.ne.s32.totalorder %s38, %s41
      %p47 = scmp.eq.s32.totalorder %s16, 0
      %p48 = por %p46, %p47
      %p49 = scmp.ne.s32.totalorder %s38, %s41
      %p50 = scmp.eq.s32.totalorder %s21, 1
      %p51 = por %p49, %p50
      %p52 = scmp.ne.s32.totalorder %s41, %s42
      %p53 = scmp.eq.s32.totalorder %s21, 0
      %p54 = por %p52, %p53
      %p55 = scmp.ne.s32.totalorder %s41, %s42
      %p56 = scmp.eq.s32.totalorder %s22, 1
      %p57 = por %p55, %p56
      %p59 = scmp.ne.s32.totalorder %s42, %s58
      %p60 = scmp.eq.s32.totalorder %s22, 0
      %p61 = por %p59, %p60
      %s62 = ssub.s32 %s24, %s31
      %p63 = scmp.eq.s32.totalorder %s62, 0
      %s65 = sadd.s32 %s64, 1
      %s66 = scalar_select %p63, %s64, %s65
      %p69 = pneg %p63
      %p70 = scmp.eq.s32.totalorder %s16, 1
      %p71 = por %p69, %p70
      %p72 = scmp.ne.s32.totalorder %s64, %s67
      %p73 = scmp.eq.s32.totalorder %s16, 0
      %p74 = por %p72, %p73
      %p75 = scmp.ne.s32.totalorder %s64, %s67
      %p76 = scmp.eq.s32.totalorder %s21, 1
      %p77 = por %p75, %p76
      %p78 = scmp.ne.s32.totalorder %s67, %s68
      %p79 = scmp.eq.s32.totalorder %s21, 0
      %p80 = por %p78, %p79
      %p81 = scmp.ne.s32.totalorder %s67, %s68
      %p82 = scmp.eq.s32.totalorder %s22, 1
      %p83 = por %p81, %p82
      %p85 = scmp.ne.s32.totalorder %s68, %s84
      %p86 = scmp.eq.s32.totalorder %s22, 0
      %p87 = por %p85, %p86
      %s88 = ssub.s32 %s24, %s31
      %p89 = scmp.eq.s32.totalorder %s88, 0
      %s91 = sadd.s32 %s90, 1
      %s92 = scalar_select %p89, %s90, %s91
      %p95 = pneg %p89
      %p96 = scmp.eq.s32.totalorder %s16, 1
      %p97 = por %p95, %p96
      %p98 = scmp.ne.s32.totalorder %s90, %s93
      %p99 = scmp.eq.s32.totalorder %s16, 0
      %p100 = por %p98, %p99
      %p101 = scmp.ne.s32.totalorder %s90, %s93
      %p102 = scmp.eq.s32.totalorder %s21, 1
      %p103 = por %p101, %p102
      %p104 = scmp.ne.s32.totalorder %s93, %s94
      %p105 = scmp.eq.s32.totalorder %s21, 0
      %p106 = por %p104, %p105
      %p107 = scmp.ne.s32.totalorder %s93, %s94
      %p108 = scmp.eq.s32.totalorder %s22, 1
      %p109 = por %p107, %p108
      %p111 = scmp.ne.s32.totalorder %s94, %s110
      %p112 = scmp.eq.s32.totalorder %s22, 0
      %p113 = por %p111, %p112
      %s114 = ssub.s32 %s23, %s35
      %s115 = ssub.s32 %s24, %s31
      %s116 = sor.u32 %s114, %s115
      %p117 = scmp.eq.s32.totalorder %s116, 0
      %s119 = sadd.s32 %s118, 1
      %s120 = scalar_select %p117, %s118, %s119
      %p123 = pneg %p117
      %p124 = scmp.eq.s32.totalorder %s16, 1
      %p125 = por %p123, %p124
      %p126 = scmp.ne.s32.totalorder %s118, %s121
      %p127 = scmp.eq.s32.totalorder %s16, 0
      %p128 = por %p126, %p127
      %p129 = scmp.ne.s32.totalorder %s118, %s121
      %p130 = scmp.eq.s32.totalorder %s21, 1
      %p131 = por %p129, %p130
      %p132 = scmp.ne.s32.totalorder %s121, %s122
      %p133 = scmp.eq.s32.totalorder %s21, 0
      %p134 = por %p132, %p133
      %p135 = scmp.ne.s32.totalorder %s121, %s122
      %p136 = scmp.eq.s32.totalorder %s22, 1
      %p137 = por %p135, %p136
      %p139 = scmp.ne.s32.totalorder %s122, %s138
      %p140 = scmp.eq.s32.totalorder %s22, 0
      %p141 = por %p139, %p140
      %p142 = scmp.le.s32.totalorder 1, %s16
      %p143 = scmp.lt.s32.totalorder %s16, 3
      %p144 = pnand %p142, %p143
      %p145 = pneg %p144
      // Predicated region
      $region9: #{tpu_custom_call.1} parent=5 // pred_check
        _
      $region10: #{tpu_custom_call.1} parent=5 // pred_check_branch
        %147 = sbr.rel (%p144) target = $region12
      $region11: #{tpu_custom_call.1} parent=5 // pred_region
        %s148 = ssub.s32 %s16, 1
        // Predicated region
        $region13: #{tpu_custom_call.1} parent=11 // pred_check
          %p149 = pneg %p80
        $region14: #{tpu_custom_call.1} parent=11 // pred_check_branch
          %151 = sbr.rel (%p149) target = $region16
        $region15: #{tpu_custom_call.1} parent=11 // pred_region
          %s153 = ssub.s32 256, 256
          %154 = vsyncadd [#allocation6], %s153
          %s155 = smul.addr %s26, 64
          %s156 = scalar_lea.hbm %s1, %s155
          %s157 = sshll.u32 [#allocation5], 4
          %s158 = int_to_ptr.vmem [resolvable:$true] %s157
          %163 = dma.hbm_to_vmem [thread:$0]  %s156, 256, %s158, [#allocation6], 64, 64, 4
        $region16: #{tpu_custom_call.1} parent=11 // pred_fallthru
          _
        // Predicated region
        $region17: #{tpu_custom_call.1} parent=11 // pred_check
          %p164 = pneg %p106
        $region18: #{tpu_custom_call.1} parent=11 // pred_check_branch
          %166 = sbr.rel (%p164) target = $region20
        $region19: #{tpu_custom_call.1} parent=11 // pred_region
          %p167 = scmp.lt.s32.totalorder %s26, 0
          %s168 = scalar_select %p167, %s26, 0
          %s169 = scalar_lea.vmem %s2, %s168
        $region20: #{tpu_custom_call.1} parent=11 // pred_fallthru
          _
      $region12: #{tpu_custom_call.1} parent=5 // pred_fallthru
        _
      %p170 = scmp.lt.s32.totalorder %s16, 2
      // Predicated region
      $region21: #{tpu_custom_call.1} parent=5 // pred_check
        %p171 = pneg %p170
      $region22: #{tpu_custom_call.1} parent=5 // pred_check_branch
        %173 = sbr.rel (%p171) target = $region24
      $region23: #{tpu_custom_call.1} parent=5 // pred_region
        // Predicated region
        $region25: #{tpu_custom_call.1} parent=23 // pred_check
          %p174 = pneg %p48
        $region26: #{tpu_custom_call.1} parent=23 // pred_check_branch
          %176 = sbr.rel (%p174) target = $region28
        $region27: #{tpu_custom_call.1} parent=23 // pred_region
          %s177 = sand.u32 %s38, 1
          %s178 = scalar_lea.sflag [#allocation3], %s177
          %s179 = sand.u32 %s38, 1
          %s180 = smul.addr %s179, 8
          %s181 = scalar_lea.vmem [#allocation2], %s180
          %s183 = ssub.s32 128, 128
          %184 = vsyncadd %s178, %s183
          %s185 = smul.addr %s23, 128
          %s186 = scalar_lea.hbm %s0, %s185
          %s188 = sshll.u32 %s181, 4
          %s189 = int_to_ptr.vmem [resolvable:$true] %s188
          %191 = dma.hbm_to_vmem [thread:$0]  %s186, 128, %s189, %s178
        $region28: #{tpu_custom_call.1} parent=23 // pred_fallthru
          _
      $region24: #{tpu_custom_call.1} parent=5 // pred_fallthru
        _
      %p192 = scmp.le.s32.totalorder 1, %s16
      %p193 = scmp.lt.s32.totalorder %s16, 3
      %p194 = pnand %p192, %p193
      %p195 = pneg %p194
      // Predicated region
      $region29: #{tpu_custom_call.1} parent=5 // pred_check
        _
      $region30: #{tpu_custom_call.1} parent=5 // pred_check_branch
        %197 = sbr.rel (%p194) target = $region32
      $region31: #{tpu_custom_call.1} parent=5 // pred_region
        %s198 = ssub.s32 %s16, 1
        %s199 = sand.u32 %s41, 1
        %s200 = scalar_lea.sflag [#allocation3], %s199
        %s201 = sand.u32 %s41, 1
        %s202 = smul.addr %s201, 8
        %s203 = scalar_lea.vmem [#allocation2], %s202
        // Predicated region
        $region33: #{tpu_custom_call.1} parent=31 // pred_check
          %p204 = pneg %p54
        $region34: #{tpu_custom_call.1} parent=31 // pred_check_branch
          %206 = sbr.rel (%p204) target = $region36
        $region35: #{tpu_custom_call.1} parent=31 // pred_region
          %207 = dma.done %s200, 128
        $region36: #{tpu_custom_call.1} parent=31 // pred_fallthru
          _
        // Predicated region
        $region37: #{tpu_custom_call.1} parent=31 // pred_check
          %p208 = pneg %p80
        $region38: #{tpu_custom_call.1} parent=31 // pred_check_branch
          %210 = sbr.rel (%p208) target = $region40
        $region39: #{tpu_custom_call.1} parent=31 // pred_region
          %211 = dma.done [#allocation6], 256
        $region40: #{tpu_custom_call.1} parent=31 // pred_fallthru
          _
        %s212 = sand.u32 %s41, 1
        %s213 = scalar_lea.sflag [#allocation3], %s212
        %s214 = sand.u32 %s41, 1
        %s215 = smul.addr %s214, 8
        %s216 = scalar_lea.vmem [#allocation2], %s215
        %p217 = pneg %p54
        %p218 = pneg %p51
        %p219 = pneg %p80
        %p220 = pneg %p77
        %p221 = scmp.lt.s32.totalorder %s26, 0
        %s222 = scalar_select %p221, %s26, 0
        %s223 = scalar_lea.vmem %s2, %s222
        %p224 = pneg %p106
        %p225 = pneg %p103
        %p226 = pneg %p134
        %p227 = pneg %p131
        %s228 = sand.u32 %s121, 1
        %s229 = scalar_lea.sflag [#allocation4], %s228
        %s230 = sand.u32 %s121, 1
        %s231 = smul.addr %s230, 8
        %s232 = scalar_lea.vmem [#allocation7], %s231
        %p233 = scmp.lt.s32.totalorder %s26, 0
        %s234 = scalar_select %p233, %s26, 0
        %s235 = scalar_lea.vmem %s2, %s234
        %v237 = vld [vmem:[%s203] sm:$0xff]
        %v238 = vpack.c.bf16 %v237, %v237
        %v239 = vld [vmem:[#allocation5] sm:$0xf]
        %v240 = vld [vmem:[#allocation5 + $0x4] sm:$0xf]
        %v241 = vld [vmem:[#allocation5 + $0x8] sm:$0xf]
        %v242 = vld [vmem:[#allocation5 + $0xc] sm:$0xf]
        %v243 = vld [vmem:[%s235] sm:$0x1]
        %v245 = vlaneseq
        %v246 = vshrl.u32 %v245, 7
        %v247 = vsub.s32 0, %v246
        %v248 = vrot.slane %v243, %v247
        %v250 = vadd.f32 %v237, %v248
        %v255 = vunpack.c.l.b16 %v239
        %v256 = vunpack.c.l.b16 %v240
        %v257 = vunpack.c.l.b16 %v241
        %v258 = vunpack.c.l.b16 %v242
        %v259 = vpack.c.b16 %v256, %v255
        %v260 = vpack.c.b16 %v258, %v257
        %vm263 = vcmask 261120
        %v265 = vsel %vm263, %v238, 0
        %267 = vmatprep.subr.bf16.mxu0 0
        %268 = vmatpush1.bf16.msra.mxu0 0
        %269 = vmatprep.subr.bf16.mxu0 0
        %270 = vmatpush1.bf16.msra.mxu0 0
        %271 = vmatprep.subr.bf16.mxu0 0
        %272 = vmatpush1.bf16.msra.mxu0 0
        %273 = vmatprep.subr.bf16.mxu0 0
        %274 = vmatpush1.bf16.msra.mxu0 0
        %275 = vmatprep.subr.bf16.mxu0 0
        %276 = vmatpush1.bf16.msra.mxu0 0
        %277 = vmatprep.subr.bf16.mxu0 0
        %278 = vmatpush1.bf16.msra.mxu0 0
        %279 = vmatprep.subr.bf16.mxu0 0
        %280 = vmatpush1.bf16.msra.mxu0 %v260
        %281 = vmatprep.subr.bf16.mxu0 0
        %282 = vmatpush1.bf16.msra.mxu0 %v259
        %283 = vmatprep.subr.bf16.mxu0 0
        %284 = vmatpush2.bf16.msra.mxu0 0
        %285 = vmatprep.subr.bf16.mxu0 0
        %286 = vmatpush2.bf16.msra.mxu0 0
        %287 = vmatprep.subr.bf16.mxu0 0
        %288 = vmatpush2.bf16.msra.mxu0 0
        %289 = vmatprep.subr.bf16.mxu0 0
        %290 = vmatpush2.bf16.msra.mxu0 0
        %291 = vmatprep.subr.bf16.mxu0 0
        %292 = vmatpush2.bf16.msra.mxu0 0
        %293 = vmatprep.subr.bf16.mxu0 0
        %294 = vmatpush2.bf16.msra.mxu0 0
        %295 = vmatprep.subr.bf16.mxu0 0
        %296 = vmatpush2.bf16.msra.mxu0 0
        %297 = vmatprep.subr.bf16.mxu0 0
        %298 = vmatpush2.bf16.msra.mxu0 0
        %299 = vmatprep.mubr.bf16.mxu0 0
        %300 = vmatmul.mubr.bf16.gmra.mxu0 %v265
        %v301 = vpop.f32.mrf.mxu0
        %v302 = vadd.f32 %v250, %v301
        %v303 = vpop.f32.mrf.mxu0
        %v304 = vpop.f32.mrf.mxu0
        %v305 = vpop.f32.mrf.mxu0
        %306 = vdwg.mxu0
        %307 = vst.msk [vmem:[%s232] sm:$0xff] %vm263, %v302
        %s308 = sand.u32 %s121, 1
        %s309 = scalar_lea.sflag [#allocation4], %s308
        %s310 = sand.u32 %s121, 1
        %s311 = smul.addr %s310, 8
        %s312 = scalar_lea.vmem [#allocation7], %s311
        // Predicated region
        $region41: #{tpu_custom_call.1} parent=31 // pred_check
          %p313 = pneg %p131
        $region42: #{tpu_custom_call.1} parent=31 // pred_check_branch
          %315 = sbr.rel (%p313) target = $region44
        $region43: #{tpu_custom_call.1} parent=31 // pred_region
          %s317 = ssub.s32 128, 128
          %318 = vsyncadd %s309, %s317
          %s319 = sadd.s32 %s26, %s25
          %s320 = smul.addr %s319, 128
          %s321 = scalar_lea.hbm %s3, %s320
          %s323 = sshll.u32 %s312, 4
          %s324 = int_to_ptr.vmem [resolvable:$true] %s323
          %326 = dma.vmem_to_hbm [thread:$0]  %s324, 128, %s321, %s309
        $region44: #{tpu_custom_call.1} parent=31 // pred_fallthru
          _
      $region32: #{tpu_custom_call.1} parent=5 // pred_fallthru
        _
      %p327 = scmp.le.s32.totalorder 2, %s16
      // Predicated region
      $region45: #{tpu_custom_call.1} parent=5 // pred_check
        %p328 = pneg %p327
      $region46: #{tpu_custom_call.1} parent=5 // pred_check_branch
        %330 = sbr.rel (%p328) target = $region48
      $region47: #{tpu_custom_call.1} parent=5 // pred_region
        %s331 = ssub.s32 %s16, 2
        // Predicated region
        $region49: #{tpu_custom_call.1} parent=47 // pred_check
          %p332 = pneg %p137
        $region50: #{tpu_custom_call.1} parent=47 // pred_check_branch
          %334 = sbr.rel (%p332) target = $region52
        $region51: #{tpu_custom_call.1} parent=47 // pred_region
          %s335 = sand.u32 %s122, 1
          %s336 = scalar_lea.sflag [#allocation4], %s335
          %s337 = sand.u32 %s122, 1
          %s338 = smul.addr %s337, 8
          %s339 = scalar_lea.vmem [#allocation7], %s338
          %340 = dma.done %s336, 128
        $region52: #{tpu_custom_call.1} parent=47 // pred_fallthru
          _
      $region48: #{tpu_custom_call.1} parent=5 // pred_fallthru
        _
    $region6: #{tpu_custom_call.1} parent=1 // loop_footer
      %s20 = sadd.s32 1, %s16
    $region7: #{tpu_custom_call.1} parent=1 // loop_footer_branch
      %15 = sbr.rel target = $region3
    $region8: #{tpu_custom_call.1} parent=1 // loop_exit
      _
    %341 = vsyncpa [#allocation3], 1
    %s342 = scalar_lea.sflag [#allocation3], 1
    %343 = vsyncpa %s342, 1
    %344 = vsyncpa [#allocation6], 1
    %345 = vsyncpa [#allocation4], 1
    %s346 = scalar_lea.sflag [#allocation4], 1
    %347 = vsyncpa %s346, 1

</llo_original>
